<compile_context>
chip_gen: v7x
topology: tpu7x:2x2x1
jax: 0.10.0
libtpu: 0.0.40
codegen_flags: <defaults>
</compile_context>

<pallas_src>
import jax
import jax.numpy as jnp
from jax.experimental import pallas as pl
from jax.experimental.pallas import tpu as pltpu


def _s(z, k, b):
    """Original torch form: s(z,k,b) = b*(k-1)*(z/b-1) / (k - 4k|z-b| - 1)."""
    return b * (k - 1.0) * (z / b - 1.0) / (k - 4.0 * k * jnp.abs(z - b) - 1.0)


def _interp_kernel(p_ref, x_ref, out_ref):
    # p_ref (SMEM, f32[10]) =
    #   [b_pos, k_pos-1, 4*k_pos, c_pos, 1/d_pos,
    #    b_neg, k_neg-1, 4*k_neg, c_neg, 1/d_neg]
    bp, km1p, fkp, cp, idp = p_ref[0], p_ref[1], p_ref[2], p_ref[3], p_ref[4]
    bn, km1n, fkn, cn, idn = p_ref[5], p_ref[6], p_ref[7], p_ref[8], p_ref[9]

    x = x_ref[...].astype(jnp.float32)
    z = 1.0 / (1.0 + jnp.exp(-x))                      # torch.sigmoid(x)

    # tunable_sigmoid(z, k_pos, b_pos)
    dzp = z - bp
    p_pos = (km1p * dzp / (km1p - fkp * jnp.abs(dzp)) + cp) * idp

    # tunable_sigmoid(1 - z, k_neg, b_neg)
    dzn = (1.0 - z) - bn
    p_neg = (km1n * dzn / (km1n - fkn * jnp.abs(dzn)) + cn) * idn

    p_mid = jnp.maximum(1.0 - p_pos - p_neg, 1e-10)

    out_ref[0, :, :] = jnp.log(p_neg)
    out_ref[1, :, :] = jnp.log(p_mid)
    out_ref[2, :, :] = jnp.log(p_pos)


def interpolated_output(x, k_pos, b_pos, k_neg, b_neg):
    """Pallas implementation of InterpolatedOutput.forward (log=True).

    x: pre-sigmoid model output, arbitrary shape (element count % 128 == 0).
    Returns an array of shape x.shape + (3,) holding log([p_neg, p_mid, p_pos]).
    """
    orig_shape = x.shape
    total = x.size
    assert total % 128 == 0, "requires element count divisible by 128"

    # Widest lane-dense slab that divides the element count.
    C = 128
    for cand in (1024, 512, 256):
        if total % cand == 0:
            C = cand
            break
    R = total // C
    x2d = x.reshape(R, C)   # no dtype cast here; cast happens in-kernel

    # ---- scalar parameter setup (plain JAX glue, negligible) ----
    kp = jax.nn.sigmoid(k_pos.astype(jnp.float32))[0]
    bp = jax.nn.sigmoid(b_pos.astype(jnp.float32))[0]
    kn = jax.nn.sigmoid(k_neg.astype(jnp.float32))[0]
    bn = jax.nn.sigmoid(b_neg.astype(jnp.float32))[0]
    cp = _s(2.0 * bp, kp, bp)
    dp = _s(1.0, kp, bp) + cp
    cn = _s(2.0 * bn, kn, bn)
    dn = _s(1.0, kn, bn) + cn
    params = jnp.stack(
        [bp, kp - 1.0, 4.0 * kp, cp, 1.0 / dp,
         bn, kn - 1.0, 4.0 * kn, cn, 1.0 / dn]
    ).astype(jnp.float32)

    # ---- row tiling: ~1 MiB f32 input tile -> ~4 MiB per grid step including
    # the 3 output planes, x2 double-buffers ~= 8 MiB (fits v5e's 16 MiB). ----
    rows_per_tile = max(8, (256 * 1024) // C)
    TR = R if R <= rows_per_tile else rows_per_tile
    grid = (pl.cdiv(R, TR),)

    out3 = pl.pallas_call(
        _interp_kernel,
        out_shape=jax.ShapeDtypeStruct((3, R, C), jnp.float32),
        grid=grid,
        in_specs=[
            pl.BlockSpec(memory_space=pltpu.MemorySpace.SMEM),
            pl.BlockSpec((TR, C), lambda i: (i, 0)),
        ],
        out_specs=pl.BlockSpec((3, TR, C), lambda i: (0, i, 0)),
        compiler_params=pltpu.CompilerParams(
            dimension_semantics=("parallel",)),
    )(params, x2d)

    # Preserve torch.stack(dim=-1) semantics: (3, ...) -> (..., 3).
    # For best performance a downstream consumer should accept the
    # leading-axis-3 layout directly and skip this layout pass.
    return jnp.moveaxis(out3.reshape((3,) + orig_shape), 0, -1)


def _reference(x, k_pos, b_pos, k_neg, b_neg):
    """Pure-JAX reference mirroring the PyTorch module exactly."""
    def tunable_sigmoid(v, k, b):
        return (_s(v, k, b) + _s(2.0 * b, k, b)) / (_s(1.0, k, b) + _s(2.0 * b, k, b))

    z = jax.nn.sigmoid(x)
    kp = jax.nn.sigmoid(k_pos)[0]
    bp = jax.nn.sigmoid(b_pos)[0]
    kn = jax.nn.sigmoid(k_neg)[0]
    bn = jax.nn.sigmoid(b_neg)[0]
    p_pos = tunable_sigmoid(z, kp, bp)
    p_neg = tunable_sigmoid(1.0 - z, kn, bn)
    p_mid = jnp.maximum(1.0 - p_pos - p_neg, 1e-10)
    return jnp.log(jnp.stack([p_neg, p_mid, p_pos], axis=-1))


if __name__ == "__main__":
    # Deterministic parameter init (as in the module's __init__):
    #   k_pos = ones(1), b_pos = [0.5], k_neg = ones(1), b_neg = [0.5]
    k_pos = jnp.ones((1,), dtype=jnp.float32)
    b_pos = jnp.full((1,), 0.5, dtype=jnp.float32)
    k_neg = jnp.ones((1,), dtype=jnp.float32)
    b_neg = jnp.full((1,), 0.5, dtype=jnp.float32)

    key = jax.random.PRNGKey(0)
    x = jax.random.normal(key, (2, 4, 16, 16), dtype=jnp.float32)  # NCHW pre-sigmoid logits

    out = interpolated_output(x, k_pos, b_pos, k_neg, b_neg)
    out = jax.block_until_ready(out)

    ref = _reference(x, k_pos, b_pos, k_neg, b_neg)
    assert out.shape == x.shape + (3,), out.shape
    assert jnp.allclose(out, ref, atol=1e-5, rtol=1e-5), "mismatch vs reference"

    print("KERNEL_OK")
</pallas_src>

<mosaic_0001>
module attributes {stable_mosaic.version = 11 : i64} {
  func.func @_interp_kernel(%arg0: i32, %arg1: memref<10xf32, #tpu.memory_space<smem>>, %arg2: memref<2x1024xf32, #tpu.memory_space<vmem>>, %arg3: memref<3x2x1024xf32, #tpu.memory_space<vmem>>) attributes {dimension_semantics = [#tpu.dimension_semantics<parallel>], iteration_bounds = array<i64: 1>, scalar_prefetch = 0 : i64, scratch_operands = 0 : i64, tpu.core_type = #tpu.core_type<tc>, window_params = [{transform_indices = @transform_0, window_bounds = array<i64: 10>}, {transform_indices = @transform_1, window_bounds = array<i64: 2, 1024>}, {transform_indices = @transform_2, window_bounds = array<i64: 3, 2, 1024>}]} {
    %c0 = arith.constant 0 : index
    %0 = memref.load %arg1[%c0] : memref<10xf32, #tpu.memory_space<smem>>
    %c1 = arith.constant 1 : index
    %1 = memref.load %arg1[%c1] : memref<10xf32, #tpu.memory_space<smem>>
    %c2 = arith.constant 2 : index
    %2 = memref.load %arg1[%c2] : memref<10xf32, #tpu.memory_space<smem>>
    %c3 = arith.constant 3 : index
    %3 = memref.load %arg1[%c3] : memref<10xf32, #tpu.memory_space<smem>>
    %c4 = arith.constant 4 : index
    %4 = memref.load %arg1[%c4] : memref<10xf32, #tpu.memory_space<smem>>
    %c5 = arith.constant 5 : index
    %5 = memref.load %arg1[%c5] : memref<10xf32, #tpu.memory_space<smem>>
    %c6 = arith.constant 6 : index
    %6 = memref.load %arg1[%c6] : memref<10xf32, #tpu.memory_space<smem>>
    %c7 = arith.constant 7 : index
    %7 = memref.load %arg1[%c7] : memref<10xf32, #tpu.memory_space<smem>>
    %c8 = arith.constant 8 : index
    %8 = memref.load %arg1[%c8] : memref<10xf32, #tpu.memory_space<smem>>
    %c9 = arith.constant 9 : index
    %9 = memref.load %arg1[%c9] : memref<10xf32, #tpu.memory_space<smem>>
    %c0_0 = arith.constant 0 : index
    %c0_1 = arith.constant 0 : index
    %10 = vector.load %arg2[%c0_0, %c0_1] : memref<2x1024xf32, #tpu.memory_space<vmem>>, vector<2x1024xf32>
    %cst = arith.constant 0.000000e+00 : f32
    %11 = vector.broadcast %cst : f32 to vector<2x1024xf32>
    %12 = arith.subf %11, %10 : vector<2x1024xf32>
    %13 = math.exp %12 : vector<2x1024xf32>
    %cst_2 = arith.constant 1.000000e+00 : f32
    %14 = vector.broadcast %cst_2 : f32 to vector<2x1024xf32>
    %15 = arith.addf %14, %13 : vector<2x1024xf32>
    %cst_3 = arith.constant 1.000000e+00 : f32
    %16 = vector.broadcast %cst_3 : f32 to vector<2x1024xf32>
    %17 = arith.divf %16, %15 : vector<2x1024xf32>
    %18 = vector.broadcast %0 : f32 to vector<2x1024xf32>
    %19 = arith.subf %17, %18 : vector<2x1024xf32>
    %20 = vector.broadcast %1 : f32 to vector<2x1024xf32>
    %21 = arith.mulf %20, %19 : vector<2x1024xf32>
    %22 = math.absf %19 : vector<2x1024xf32>
    %23 = vector.broadcast %2 : f32 to vector<2x1024xf32>
    %24 = arith.mulf %23, %22 : vector<2x1024xf32>
    %25 = vector.broadcast %1 : f32 to vector<2x1024xf32>
    %26 = arith.subf %25, %24 : vector<2x1024xf32>
    %27 = arith.divf %21, %26 : vector<2x1024xf32>
    %28 = vector.broadcast %3 : f32 to vector<2x1024xf32>
    %29 = arith.addf %27, %28 : vector<2x1024xf32>
    %30 = vector.broadcast %4 : f32 to vector<2x1024xf32>
    %31 = arith.mulf %29, %30 : vector<2x1024xf32>
    %cst_4 = arith.constant 1.000000e+00 : f32
    %32 = vector.broadcast %cst_4 : f32 to vector<2x1024xf32>
    %33 = arith.subf %32, %17 : vector<2x1024xf32>
    %34 = vector.broadcast %5 : f32 to vector<2x1024xf32>
    %35 = arith.subf %33, %34 : vector<2x1024xf32>
    %36 = vector.broadcast %6 : f32 to vector<2x1024xf32>
    %37 = arith.mulf %36, %35 : vector<2x1024xf32>
    %38 = math.absf %35 : vector<2x1024xf32>
    %39 = vector.broadcast %7 : f32 to vector<2x1024xf32>
    %40 = arith.mulf %39, %38 : vector<2x1024xf32>
    %41 = vector.broadcast %6 : f32 to vector<2x1024xf32>
    %42 = arith.subf %41, %40 : vector<2x1024xf32>
    %43 = arith.divf %37, %42 : vector<2x1024xf32>
    %44 = vector.broadcast %8 : f32 to vector<2x1024xf32>
    %45 = arith.addf %43, %44 : vector<2x1024xf32>
    %46 = vector.broadcast %9 : f32 to vector<2x1024xf32>
    %47 = arith.mulf %45, %46 : vector<2x1024xf32>
    %cst_5 = arith.constant 1.000000e+00 : f32
    %48 = vector.broadcast %cst_5 : f32 to vector<2x1024xf32>
    %49 = arith.subf %48, %31 : vector<2x1024xf32>
    %50 = arith.subf %49, %47 : vector<2x1024xf32>
    %cst_6 = arith.constant 1.000000e-10 : f32
    %51 = vector.broadcast %cst_6 : f32 to vector<2x1024xf32>
    %52 = arith.maximumf %50, %51 : vector<2x1024xf32>
    %53 = math.log %47 : vector<2x1024xf32>
    %c0_7 = arith.constant 0 : index
    %c0_8 = arith.constant 0 : index
    %c0_9 = arith.constant 0 : index
    %54 = vector.load %arg3[%c0_7, %c0_8, %c0_9] : memref<3x2x1024xf32, #tpu.memory_space<vmem>>, vector<1x2x1024xf32>
    %55 = vector.shape_cast %54 : vector<1x2x1024xf32> to vector<2x1024xf32>
    %56 = vector.shape_cast %53 : vector<2x1024xf32> to vector<1x2x1024xf32>
    tpu.vector_store %arg3[%c0_7, %c0_8, %c0_9], %56 {strides = array<i32>} : memref<3x2x1024xf32, #tpu.memory_space<vmem>>, vector<1x2x1024xf32>,
    %57 = math.log %52 : vector<2x1024xf32>
    %c1_10 = arith.constant 1 : index
    %c0_11 = arith.constant 0 : index
    %c0_12 = arith.constant 0 : index
    %58 = vector.load %arg3[%c1_10, %c0_11, %c0_12] : memref<3x2x1024xf32, #tpu.memory_space<vmem>>, vector<1x2x1024xf32>
    %59 = vector.shape_cast %58 : vector<1x2x1024xf32> to vector<2x1024xf32>
    %60 = vector.shape_cast %57 : vector<2x1024xf32> to vector<1x2x1024xf32>
    tpu.vector_store %arg3[%c1_10, %c0_11, %c0_12], %60 {strides = array<i32>} : memref<3x2x1024xf32, #tpu.memory_space<vmem>>, vector<1x2x1024xf32>,
    %61 = math.log %31 : vector<2x1024xf32>
    %c2_13 = arith.constant 2 : index
    %c0_14 = arith.constant 0 : index
    %c0_15 = arith.constant 0 : index
    %62 = vector.load %arg3[%c2_13, %c0_14, %c0_15] : memref<3x2x1024xf32, #tpu.memory_space<vmem>>, vector<1x2x1024xf32>
    %63 = vector.shape_cast %62 : vector<1x2x1024xf32> to vector<2x1024xf32>
    %64 = vector.shape_cast %61 : vector<2x1024xf32> to vector<1x2x1024xf32>
    tpu.vector_store %arg3[%c2_13, %c0_14, %c0_15], %64 {strides = array<i32>} : memref<3x2x1024xf32, #tpu.memory_space<vmem>>, vector<1x2x1024xf32>,
    return
  }
  func.func @transform_0(%arg0: i32) -> i32 {
    %c0_i32 = arith.constant 0 : i32
    %c0_i32_0 = arith.constant 0 : i32
    return %c0_i32 : i32
  }
  func.func @transform_1(%arg0: i32) -> (i32, i32) {
    %c0_i32 = arith.constant 0 : i32
    %c0_i32_0 = arith.constant 0 : i32
    return %arg0, %c0_i32 : i32, i32
  }
  func.func @transform_2(%arg0: i32) -> (i32, i32, i32) {
    %c0_i32 = arith.constant 0 : i32
    %c0_i32_0 = arith.constant 0 : i32
    %c0_i32_1 = arith.constant 0 : i32
    return %c0_i32, %arg0, %c0_i32_0 : i32, i32, i32
  }
}

</mosaic_0001>

<llo_original>
// kernel: tpu_custom_call.1
$region0: #{tpu_custom_call.1}
  #allocation0 [shape = 'u32[]', space=smem, size = 0x4, offset = 0x4, fixed_abs, tag = 'smem constant byte address 0x4 - core index']
  #allocation1 [shape = 'u32[144,128]{1,0:T(1,128)}', space=vmem, size = 0x12000, scoped, tag = 'internal scratch']
  %s0 = inlined_call_operand.hbm [shape: f32[10], index: 0, kind: input, shape index: {}]
  %s1 = inlined_call_operand.hbm [shape: f32[2,1024], index: 1, kind: input, shape index: {}]
  %s2 = inlined_call_operand.hbm [shape: f32[3,2,1024], index: 2, kind: output, shape index: {}]
  %s3 = sld [smem:[#allocation0]]
  $region26: #{tpu_custom_call.1} parent=0
    _
  %s5 = ssub.s32 1, %s3
  %s6 = scalar_select 0, %s5, %s3
  $region1: #{tpu_custom_call.1} parent=0
    #allocation2 [shape = 'u8[512]{0}', space=smem, size = 0x200, scoped, tag = 'input window, operand 0, single buffered']
    #allocation3 [shape = 's32[1]{0}', space=sflag, size = 0x4, scoped, tag = 'scoped memory for tpu_custom_call.1']
    #allocation4 [shape = 's32[1]{0}', space=sflag, size = 0x4, scoped, tag = 'scoped memory for tpu_custom_call.1']
    #allocation5 [shape = 's32[1]{0}', space=sflag, size = 0x4, scoped, tag = 'scoped memory for tpu_custom_call.1']
    #allocation6 [shape = 'u8[8192]{0}', space=vmem, size = 0x2000, scoped, tag = 'input window, operand 1, single buffered']
    #allocation7 [shape = 'u8[24576]{0}', space=vmem, size = 0x6000, scoped, tag = 'output window, operand 0, single buffered']
    %7 = vsyncpa [#allocation5], 0
    %8 = vsyncpa [#allocation3], 0
    %9 = vsyncpa [#allocation4], 0
    // Predicated region
    $region2: #{tpu_custom_call.1} parent=1 // pred_check
      _
    $region3: #{tpu_custom_call.1} parent=1 // pred_check_branch
      %11 = sbr.rel (0) target = $region5
    $region4: #{tpu_custom_call.1} parent=1 // pred_region
      %s13 = ssub.s32 16, 16
      %14 = vsyncadd [#allocation5], %s13
      %17 = dma.hbm_to_smem %s0, 16, [#allocation2], [#allocation5]
    $region5: #{tpu_custom_call.1} parent=1 // pred_fallthru
      _
    // Predicated region
    $region6: #{tpu_custom_call.1} parent=1 // pred_check
      _
    $region7: #{tpu_custom_call.1} parent=1 // pred_check_branch
      %19 = sbr.rel (0) target = $region9
    $region8: #{tpu_custom_call.1} parent=1 // pred_region
      %s21 = ssub.s32 256, 256
      %22 = vsyncadd [#allocation3], %s21
      %s24 = sshll.u32 [#allocation6], 4
      %s25 = int_to_ptr.vmem [resolvable:$true] %s24
      %27 = dma.hbm_to_vmem [thread:$0]  %s1, 256, %s25, [#allocation3]
    $region9: #{tpu_custom_call.1} parent=1 // pred_fallthru
      _
    // Predicated region
    $region10: #{tpu_custom_call.1} parent=1 // pred_check
      _
    $region11: #{tpu_custom_call.1} parent=1 // pred_check_branch
      %29 = sbr.rel (0) target = $region13
    $region12: #{tpu_custom_call.1} parent=1 // pred_region
      %30 = dma.done [#allocation5], 16
    $region13: #{tpu_custom_call.1} parent=1 // pred_fallthru
      _
    // Predicated region
    $region14: #{tpu_custom_call.1} parent=1 // pred_check
      _
    $region15: #{tpu_custom_call.1} parent=1 // pred_check_branch
      %32 = sbr.rel (0) target = $region17
    $region16: #{tpu_custom_call.1} parent=1 // pred_region
      %33 = dma.done [#allocation3], 256
    $region17: #{tpu_custom_call.1} parent=1 // pred_fallthru
      _
    %34 = sfence
    %s35 = sld [smem:[#allocation2]]
    %s36 = sld [smem:[#allocation2 + $0x1]]
    %s37 = sld [smem:[#allocation2 + $0x2]]
    %s38 = sld [smem:[#allocation2 + $0x3]]
    %s39 = sld [smem:[#allocation2 + $0x4]]
    %s40 = sld [smem:[#allocation2 + $0x5]]
    %s41 = sld [smem:[#allocation2 + $0x6]]
    %s42 = sld [smem:[#allocation2 + $0x7]]
    %s43 = sld [smem:[#allocation2 + $0x8]]
    %s44 = sld [smem:[#allocation2 + $0x9]]
    %v45 = vld [vmem:[#allocation6] sm:$0xff]
    %v46 = vld [vmem:[#allocation6 + $0x8] sm:$0xff]
    %v47 = vsub.f32 0.0, %v45
    %v48 = vsub.f32 0.0, %v46
    %v49 = vmul.f32 %v47, 1.442695
    %v50 = vpow.pop %v49
    %v51 = vmul.f32 %v48, 1.442695
    %v52 = vpow.pop %v51
    %v53 = vadd.f32 %v50, 1.0
    %v54 = vadd.f32 %v52, 1.0
    %v55 = vrcp.pop %v53
    %v56 = vmul.f32 1.0, %v55
    %v57 = vrcp.pop %v54
    %v58 = vmul.f32 1.0, %v57
    %v59 = vstv %s35
    %v60 = vsub.f32 %v56, %v59
    %v61 = vsub.f32 %v58, %v59
    %v62 = vstv %s36
    %v63 = vmul.f32 %v62, %v60
    %v64 = vmul.f32 %v62, %v61
    %v65 = vand.u32 2147483647, %v60
    %v66 = vand.u32 2147483647, %v61
    %v67 = vstv %s37
    %v68 = vmul.f32 %v67, %v65
    %v69 = vmul.f32 %v67, %v66
    %v70 = vsub.f32 %v62, %v68
    %v71 = vsub.f32 %v62, %v69
    %v72 = vrcp.pop %v70
    %v73 = vmul.f32 %v63, %v72
    %v74 = vrcp.pop %v71
    %v75 = vmul.f32 %v64, %v74
    %v76 = vstv %s38
    %v77 = vadd.f32 %v73, %v76
    %v78 = vadd.f32 %v75, %v76
    %v79 = vstv %s39
    %v80 = vmul.f32 %v77, %v79
    %v81 = vmul.f32 %v78, %v79
    %v82 = vsub.f32 1.0, %v56
    %v83 = vsub.f32 1.0, %v58
    %v84 = vstv %s40
    %v85 = vsub.f32 %v82, %v84
    %v86 = vsub.f32 %v83, %v84
    %v87 = vstv %s41
    %v88 = vmul.f32 %v87, %v85
    %v89 = vmul.f32 %v87, %v86
    %v90 = vand.u32 2147483647, %v85
    %v91 = vand.u32 2147483647, %v86
    %v92 = vstv %s42
    %v93 = vmul.f32 %v92, %v90
    %v94 = vmul.f32 %v92, %v91
    %v95 = vsub.f32 %v87, %v93
    %v96 = vsub.f32 %v87, %v94
    %v97 = vrcp.pop %v95
    %v98 = vmul.f32 %v88, %v97
    %v99 = vrcp.pop %v96
    %v100 = vmul.f32 %v89, %v99
    %v101 = vstv %s43
    %v102 = vadd.f32 %v98, %v101
    %v103 = vadd.f32 %v100, %v101
    %v104 = vstv %s44
    %v105 = vmul.f32 %v102, %v104
    %v106 = vmul.f32 %v103, %v104
    %v107 = vsub.f32 1.0, %v80
    %v108 = vsub.f32 1.0, %v81
    %v109 = vsub.f32 %v107, %v105
    %v110 = vsub.f32 %v108, %v106
    %v111 = vmax.f32 %v109, 1e-10
    %v112 = vmax.f32 %v110, 1e-10
    %v113 = vlog2.pop %v105
    %v114 = vmul.f32 %v113, 0.6931472
    %v115 = vlog2.pop %v106
    %v116 = vmul.f32 %v115, 0.6931472
    %117 = vst [vmem:[#allocation7] sm:$0xff] %v114
    %118 = vst [vmem:[#allocation7 + $0x8] sm:$0xff] %v116
    %v119 = vlog2.pop %v111
    %v120 = vmul.f32 %v119, 0.6931472
    %v121 = vlog2.pop %v112
    %v122 = vmul.f32 %v121, 0.6931472
    %s123 = scalar_lea.vmem [#allocation7], 16
    %124 = vst [vmem:[%s123] sm:$0xff] %v120
    %125 = vst [vmem:[%s123 + $0x8] sm:$0xff] %v122
    %v126 = vlog2.pop %v80
    %v127 = vmul.f32 %v126, 0.6931472
    %v128 = vlog2.pop %v81
    %v129 = vmul.f32 %v128, 0.6931472
    %s130 = scalar_lea.vmem [#allocation7], 32
    %131 = vst [vmem:[%s130] sm:$0xff] %v127
    %132 = vst [vmem:[%s130 + $0x8] sm:$0xff] %v129
    // Predicated region
    $region18: #{tpu_custom_call.1} parent=1 // pred_check
      _
    $region19: #{tpu_custom_call.1} parent=1 // pred_check_branch
      %134 = sbr.rel (0) target = $region21
    $region20: #{tpu_custom_call.1} parent=1 // pred_region
      %s136 = ssub.s32 768, 768
      %137 = vsyncadd [#allocation4], %s136
      %s138 = sshll.u32 [#allocation7], 4
      %s139 = int_to_ptr.vmem [resolvable:$true] %s138
      %144 = dma.vmem_to_hbm [thread:$0]  %s139, 768, %s2, [#allocation4], 256, 256, 16
    $region21: #{tpu_custom_call.1} parent=1 // pred_fallthru
      _
    // Predicated region
    $region22: #{tpu_custom_call.1} parent=1 // pred_check
      _
    $region23: #{tpu_custom_call.1} parent=1 // pred_check_branch
      %146 = sbr.rel (0) target = $region25
    $region24: #{tpu_custom_call.1} parent=1 // pred_region
      %147 = dma.done [#allocation4], 768
    $region25: #{tpu_custom_call.1} parent=1 // pred_fallthru
      _
    %148 = vsyncpa [#allocation3], 1
    %149 = vsyncpa [#allocation4], 1
    %150 = vsyncpa [#allocation5], 1

</llo_original>
